<compile_context>
chip_gen: v7x
topology: tpu7x:2x2x1
jax: 0.10.0
libtpu: 0.0.40
codegen_flags: <defaults>
</compile_context>

<pallas_src>
import jax
import jax.numpy as jnp
from jax.experimental import pallas as pl
from jax.experimental.pallas import tpu as pltpu


def _round_up(n, m):
    return ((n + m - 1) // m) * m


def mlp_kernel(xt_ref,               # (D, TILE_B)      bf16   streamed per grid step
               w1t_ref, b1_ref,      # (128, D)  bf16 / (128, 1) f32   resident
               w2t_ref, b2_ref,      # (32, 128) bf16 / (32, 1)  f32   resident
               w3t_ref, b3_ref,      # (8, 32)   f32  / (8, 1)   f32   resident
               w4c_ref, b4_ref,      # (8, 1)    f32  / (1, 1)   f32   resident
               o_ref):               # (1, TILE_B) f32
    # Batch lives on the lane axis throughout -> full-width MXU/VPU/EUP/vst work.
    h = jnp.dot(w1t_ref[...], xt_ref[...], preferred_element_type=jnp.float32)
    h = jnp.maximum(h + b1_ref[...], 0.0)                     # (128, TILE_B) f32
    h = jnp.dot(w2t_ref[...], h.astype(jnp.bfloat16),
                preferred_element_type=jnp.float32)
    h = jnp.maximum(h + b2_ref[...], 0.0)                     # (32, TILE_B) f32
    h = jnp.dot(w3t_ref[...], h, preferred_element_type=jnp.float32)
    h = jnp.maximum(h + b3_ref[...], 0.0)                     # (8, TILE_B) f32
    # 8 -> 1: broadcast-mul + sublane reduction (VPU + XLU); avoids an M=1 matmul.
    z = jnp.sum(h * w4c_ref[...], axis=0, keepdims=True) + b4_ref[...]
    o_ref[...] = jax.nn.sigmoid(z)                            # lane-dense (1, TILE_B) store


def mlp_forward(x, params, tile_b=2048):
    """x: (batch, input_dim) f32; params: list of (W, b) with W:(in,out), b:(1,out)."""
    (w1, b1), (w2, b2), (w3, b3), (w4, b4) = params
    batch, d = x.shape

    # Lane-dense batch tiling: tile must be a multiple of 128 lanes.
    tile_b = max(128, min(tile_b, _round_up(batch, 128)))
    tile_b = _round_up(tile_b, 128)
    # Prefer >= 2 grid steps (when lane alignment allows) so v7x's two TensorCores
    # both get batch tiles under dimension_semantics=("parallel",).
    if _round_up(batch, tile_b) == tile_b and tile_b % 256 == 0:
        tile_b //= 2
    padded = _round_up(batch, tile_b)
    grid = (padded // tile_b,)

    # One wrapper pass over x: cast+transpose (and ragged-tail pad) fuse under jit.
    # Writing bf16 here halves the bytes the kernel streams back in.
    xt = x.astype(jnp.bfloat16).T                             # (d, batch)
    if padded != batch:
        xt = jnp.pad(xt, ((0, 0), (0, padded - batch)))       # pad only the last tile

    # Weight/bias layout work is done once on tiny arrays.
    w1t = w1.T.astype(jnp.bfloat16)                           # (128, d)
    w2t = w2.T.astype(jnp.bfloat16)                           # (32, 128)
    w3t = w3.T.astype(jnp.float32)                            # (8, 32)
    w4c = w4.astype(jnp.float32)                              # (8, 1)
    b1c, b2c, b3c, b4c = (b.T.astype(jnp.float32) for b in (b1, b2, b3, b4))

    def resident(arr):
        # Full-array block with a constant index map: DMA'd once, stays in VMEM.
        return pl.BlockSpec(arr.shape, lambda i: (0,) * arr.ndim)

    out = pl.pallas_call(
        mlp_kernel,
        out_shape=jax.ShapeDtypeStruct((1, padded), jnp.float32),
        grid=grid,
        in_specs=[
            pl.BlockSpec((d, tile_b), lambda i: (0, i)),      # x^T: streamed batch tiles
            resident(w1t), resident(b1c),
            resident(w2t), resident(b2c),
            resident(w3t), resident(b3c),
            resident(w4c), resident(b4c),
        ],
        out_specs=pl.BlockSpec((1, tile_b), lambda i: (0, i)),
        compiler_params=pltpu.CompilerParams(
            dimension_semantics=("parallel",)),                # megacore split on v7x
    )(xt, w1t, b1c, w2t, b2c, w3t, b3c, w4c, b4c)

    return out.T[:batch]                                      # (batch, 1)


def init_params(key, input_dim):
    """Deterministic init matching nn.Linear shapes; W stored (in, out) so y = x @ W + b."""
    dims = [input_dim, 128, 32, 8, 1]
    params = []
    for i in range(len(dims) - 1):
        fan_in, fan_out = dims[i], dims[i + 1]
        key, kw, kb = jax.random.split(key, 3)
        bound = 1.0 / (fan_in ** 0.5)
        w = jax.random.uniform(kw, (fan_in, fan_out), jnp.float32, -bound, bound)
        b = jax.random.uniform(kb, (1, fan_out), jnp.float32, -bound, bound)
        params.append((w, b))
    return params


def mlp_reference(x, params):
    h = x
    for i, (w, b) in enumerate(params):
        h = h @ w + b
        if i < len(params) - 1:
            h = jnp.maximum(h, 0.0)
    return jax.nn.sigmoid(h)


if __name__ == "__main__":
    key = jax.random.PRNGKey(0)
    key, kx = jax.random.split(key)

    batch, input_dim = 8, 64
    x = jax.random.normal(kx, (batch, input_dim), jnp.float32)
    params = init_params(key, input_dim)

    fwd = jax.jit(lambda xv: mlp_forward(xv, params))
    out = jax.block_until_ready(fwd(x))
    ref = mlp_reference(x, params)

    assert out.shape == (batch, 1), out.shape
    # bf16 MXU operands with f32 accumulation -> small drift vs. the pure-f32 reference.
    max_diff = float(jnp.max(jnp.abs(out - ref)))
    assert max_diff < 2e-2, f"max abs diff {max_diff}"

    print("KERNEL_OK")
</pallas_src>

<mosaic_0001>
module attributes {stable_mosaic.version = 11 : i64} {
  func.func @mlp_kernel(%arg0: i32, %arg1: memref<64x128xbf16, #tpu.memory_space<vmem>>, %arg2: memref<128x64xbf16, #tpu.memory_space<vmem>>, %arg3: memref<128x1xf32, #tpu.memory_space<vmem>>, %arg4: memref<32x128xbf16, #tpu.memory_space<vmem>>, %arg5: memref<32x1xf32, #tpu.memory_space<vmem>>, %arg6: memref<8x32xf32, #tpu.memory_space<vmem>>, %arg7: memref<8x1xf32, #tpu.memory_space<vmem>>, %arg8: memref<8x1xf32, #tpu.memory_space<vmem>>, %arg9: memref<1x1xf32, #tpu.memory_space<vmem>>, %arg10: memref<1x128xf32, #tpu.memory_space<vmem>>) attributes {dimension_semantics = [#tpu.dimension_semantics<parallel>], iteration_bounds = array<i64: 1>, scalar_prefetch = 0 : i64, scratch_operands = 0 : i64, tpu.core_type = #tpu.core_type<tc>, window_params = [{transform_indices = @transform_0, window_bounds = array<i64: 64, 128>}, {pipeline_mode = #tpu.pipeline_mode<synchronous>, transform_indices = @transform_1, window_bounds = array<i64: 128, 64>}, {pipeline_mode = #tpu.pipeline_mode<synchronous>, transform_indices = @transform_2, window_bounds = array<i64: 128, 1>}, {pipeline_mode = #tpu.pipeline_mode<synchronous>, transform_indices = @transform_3, window_bounds = array<i64: 32, 128>}, {pipeline_mode = #tpu.pipeline_mode<synchronous>, transform_indices = @transform_4, window_bounds = array<i64: 32, 1>}, {pipeline_mode = #tpu.pipeline_mode<synchronous>, transform_indices = @transform_5, window_bounds = array<i64: 8, 32>}, {pipeline_mode = #tpu.pipeline_mode<synchronous>, transform_indices = @transform_6, window_bounds = array<i64: 8, 1>}, {pipeline_mode = #tpu.pipeline_mode<synchronous>, transform_indices = @transform_7, window_bounds = array<i64: 8, 1>}, {pipeline_mode = #tpu.pipeline_mode<synchronous>, transform_indices = @transform_8, window_bounds = array<i64: 1, 1>}, {transform_indices = @transform_9, window_bounds = array<i64: 1, 128>}]} {
    %c0 = arith.constant 0 : index
    %c0_0 = arith.constant 0 : index
    %0 = vector.load %arg2[%c0, %c0_0] : memref<128x64xbf16, #tpu.memory_space<vmem>>, vector<128x64xbf16>
    %c0_1 = arith.constant 0 : index
    %c0_2 = arith.constant 0 : index
    %1 = vector.load %arg1[%c0_1, %c0_2] : memref<64x128xbf16, #tpu.memory_space<vmem>>, vector<64x128xbf16>
    %cst = arith.constant dense<0.000000e+00> : vector<128x128xf32>
    %2 = tpu.matmul %0, %1, %cst {dimension_numbers = #tpu.dot_dimension_numbers<[1], [0], [0], [1], [0, 0, 1, 1], [], []>} : vector<128x64xbf16>, vector<64x128xbf16>, vector<128x128xf32> -> vector<128x128xf32>
    %c0_3 = arith.constant 0 : index
    %c0_4 = arith.constant 0 : index
    %3 = vector.load %arg3[%c0_3, %c0_4] : memref<128x1xf32, #tpu.memory_space<vmem>>, vector<128x1xf32>
    %4 = vector.broadcast %3 : vector<128x1xf32> to vector<128x128xf32>
    %5 = arith.addf %2, %4 : vector<128x128xf32>
    %cst_5 = arith.constant 0.000000e+00 : f32
    %6 = vector.broadcast %cst_5 : f32 to vector<128x128xf32>
    %7 = arith.maximumf %5, %6 : vector<128x128xf32>
    %c0_6 = arith.constant 0 : index
    %c0_7 = arith.constant 0 : index
    %8 = vector.load %arg4[%c0_6, %c0_7] : memref<32x128xbf16, #tpu.memory_space<vmem>>, vector<32x128xbf16>
    %9 = arith.truncf %7 : vector<128x128xf32> to vector<128x128xbf16>
    %cst_8 = arith.constant dense<0.000000e+00> : vector<32x128xf32>
    %10 = tpu.matmul %8, %9, %cst_8 {dimension_numbers = #tpu.dot_dimension_numbers<[1], [0], [0], [1], [0, 0, 1, 1], [], []>} : vector<32x128xbf16>, vector<128x128xbf16>, vector<32x128xf32> -> vector<32x128xf32>
    %c0_9 = arith.constant 0 : index
    %c0_10 = arith.constant 0 : index
    %11 = vector.load %arg5[%c0_9, %c0_10] : memref<32x1xf32, #tpu.memory_space<vmem>>, vector<32x1xf32>
    %12 = vector.broadcast %11 : vector<32x1xf32> to vector<32x128xf32>
    %13 = arith.addf %10, %12 : vector<32x128xf32>
    %cst_11 = arith.constant 0.000000e+00 : f32
    %14 = vector.broadcast %cst_11 : f32 to vector<32x128xf32>
    %15 = arith.maximumf %13, %14 : vector<32x128xf32>
    %c0_12 = arith.constant 0 : index
    %c0_13 = arith.constant 0 : index
    %16 = vector.load %arg6[%c0_12, %c0_13] : memref<8x32xf32, #tpu.memory_space<vmem>>, vector<8x32xf32>
    %cst_14 = arith.constant dense<0.000000e+00> : vector<8x128xf32>
    %17 = tpu.matmul %16, %15, %cst_14 {dimension_numbers = #tpu.dot_dimension_numbers<[1], [0], [0], [1], [0, 0, 1, 1], [], []>} : vector<8x32xf32>, vector<32x128xf32>, vector<8x128xf32> -> vector<8x128xf32>
    %c0_15 = arith.constant 0 : index
    %c0_16 = arith.constant 0 : index
    %18 = vector.load %arg7[%c0_15, %c0_16] : memref<8x1xf32, #tpu.memory_space<vmem>>, vector<8x1xf32>
    %19 = vector.broadcast %18 : vector<8x1xf32> to vector<8x128xf32>
    %20 = arith.addf %17, %19 : vector<8x128xf32>
    %cst_17 = arith.constant 0.000000e+00 : f32
    %21 = vector.broadcast %cst_17 : f32 to vector<8x128xf32>
    %22 = arith.maximumf %20, %21 : vector<8x128xf32>
    %c0_18 = arith.constant 0 : index
    %c0_19 = arith.constant 0 : index
    %23 = vector.load %arg8[%c0_18, %c0_19] : memref<8x1xf32, #tpu.memory_space<vmem>>, vector<8x1xf32>
    %24 = vector.broadcast %23 : vector<8x1xf32> to vector<8x128xf32>
    %25 = arith.mulf %22, %24 : vector<8x128xf32>
    %cst_20 = arith.constant dense<0.000000e+00> : vector<128xf32>
    %26 = vector.multi_reduction <add>, %25, %cst_20 [0] : vector<8x128xf32> to vector<128xf32>
    %27 = vector.shape_cast %26 : vector<128xf32> to vector<1x128xf32>
    %c0_21 = arith.constant 0 : index
    %c0_22 = arith.constant 0 : index
    %28 = vector.load %arg9[%c0_21, %c0_22] : memref<1x1xf32, #tpu.memory_space<vmem>>, vector<1x1xf32>
    %29 = vector.broadcast %28 : vector<1x1xf32> to vector<1x128xf32>
    %30 = arith.addf %27, %29 : vector<1x128xf32>
    %31 = arith.negf %30 : vector<1x128xf32>
    %32 = math.exp %31 : vector<1x128xf32>
    %cst_23 = arith.constant 1.000000e+00 : f32
    %33 = vector.broadcast %cst_23 : f32 to vector<1x128xf32>
    %34 = arith.addf %33, %32 : vector<1x128xf32>
    %35 = arith.divf %33, %34 : vector<1x128xf32>
    %c0_24 = arith.constant 0 : index
    %c0_25 = arith.constant 0 : index
    %36 = vector.load %arg10[%c0_24, %c0_25] : memref<1x128xf32, #tpu.memory_space<vmem>>, vector<1x128xf32>
    tpu.vector_store %arg10[%c0_24, %c0_25], %35 {strides = array<i32>} : memref<1x128xf32, #tpu.memory_space<vmem>>, vector<1x128xf32>,
    return
  }
  func.func @transform_0(%arg0: i32) -> (i32, i32) {
    %c0_i32 = arith.constant 0 : i32
    %c0_i32_0 = arith.constant 0 : i32
    return %c0_i32, %arg0 : i32, i32
  }
  func.func @transform_1(%arg0: i32) -> (i32, i32) {
    %c0_i32 = arith.constant 0 : i32
    %c0_i32_0 = arith.constant 0 : i32
    %c0_i32_1 = arith.constant 0 : i32
    return %c0_i32, %c0_i32_0 : i32, i32
  }
  func.func @transform_2(%arg0: i32) -> (i32, i32) {
    %c0_i32 = arith.constant 0 : i32
    %c0_i32_0 = arith.constant 0 : i32
    %c0_i32_1 = arith.constant 0 : i32
    return %c0_i32, %c0_i32_0 : i32, i32
  }
  func.func @transform_3(%arg0: i32) -> (i32, i32) {
    %c0_i32 = arith.constant 0 : i32
    %c0_i32_0 = arith.constant 0 : i32
    %c0_i32_1 = arith.constant 0 : i32
    return %c0_i32, %c0_i32_0 : i32, i32
  }
  func.func @transform_4(%arg0: i32) -> (i32, i32) {
    %c0_i32 = arith.constant 0 : i32
    %c0_i32_0 = arith.constant 0 : i32
    %c0_i32_1 = arith.constant 0 : i32
    return %c0_i32, %c0_i32_0 : i32, i32
  }
  func.func @transform_5(%arg0: i32) -> (i32, i32) {
    %c0_i32 = arith.constant 0 : i32
    %c0_i32_0 = arith.constant 0 : i32
    %c0_i32_1 = arith.constant 0 : i32
    return %c0_i32, %c0_i32_0 : i32, i32
  }
  func.func @transform_6(%arg0: i32) -> (i32, i32) {
    %c0_i32 = arith.constant 0 : i32
    %c0_i32_0 = arith.constant 0 : i32
    %c0_i32_1 = arith.constant 0 : i32
    return %c0_i32, %c0_i32_0 : i32, i32
  }
  func.func @transform_7(%arg0: i32) -> (i32, i32) {
    %c0_i32 = arith.constant 0 : i32
    %c0_i32_0 = arith.constant 0 : i32
    %c0_i32_1 = arith.constant 0 : i32
    return %c0_i32, %c0_i32_0 : i32, i32
  }
  func.func @transform_8(%arg0: i32) -> (i32, i32) {
    %c0_i32 = arith.constant 0 : i32
    %c0_i32_0 = arith.constant 0 : i32
    %c0_i32_1 = arith.constant 0 : i32
    return %c0_i32, %c0_i32_0 : i32, i32
  }
  func.func @transform_9(%arg0: i32) -> (i32, i32) {
    %c0_i32 = arith.constant 0 : i32
    %c0_i32_0 = arith.constant 0 : i32
    return %c0_i32, %arg0 : i32, i32
  }
}

</mosaic_0001>

<llo_original>
// kernel: _lambda_.1
$region0: #{_lambda_.1}
  #allocation0 [shape = 'u32[]', space=smem, size = 0x4, offset = 0x4, fixed_abs, tag = 'smem constant byte address 0x4 - core index']
  #allocation1 [shape = 'u32[144,128]{1,0:T(1,128)}', space=vmem, size = 0x12000, scoped, tag = 'internal scratch']
  #allocation2 [shape = 'f32[1,1]{1,0:T(1,128)S(1)}', space=vmem, size = 0x200, scoped, tag = 'scoped memory for _lambda_.1']
  %s0 = inlined_call_operand.vmem [shape: bf16[64,128], index: 0, kind: input, shape index: {}]
  %s1 = inlined_call_operand.hbm [shape: bf16[128,64], index: 1, kind: input, shape index: {}]
  %s2 = inlined_call_operand.vmem [shape: f32[128,1], index: 2, kind: input, shape index: {}]
  %s3 = inlined_call_operand.vmem [shape: bf16[32,128], index: 3, kind: input, shape index: {}]
  %s4 = inlined_call_operand.hbm [shape: f32[32,1], index: 4, kind: input, shape index: {}]
  %s5 = inlined_call_operand.hbm [shape: f32[8,32], index: 5, kind: input, shape index: {}]
  %s6 = inlined_call_operand.hbm [shape: f32[8,1], index: 6, kind: input, shape index: {}]
  %s7 = inlined_call_operand.hbm [shape: f32[8,1], index: 7, kind: input, shape index: {}]
  %s8 = inlined_call_operand.<no memory space> [shape: f32[1,1], index: 8, kind: input, shape index: {}]
  %s9 = inlined_call_operand.vmem [shape: f32[1,128], index: 9, kind: output, shape index: {}]
  %s10 = sld [smem:[#allocation0]]
  $region66: #{_lambda_.1} parent=0
    _
  %s12 = ssub.s32 1, %s10
  %s13 = scalar_select 0, %s12, %s10
  %v14 = vstv %s8
  %15 = vst [vmem:[#allocation2] sm:$0x1] %v14
  $region1: #{_lambda_.1} parent=0
    #allocation3 [shape = 'u8[32768]{0}', space=vmem, size = 0x8000, scoped, tag = 'input window, operand 1, single buffered']
    #allocation4 [shape = 's32[1]{0}', space=sflag, size = 0x4, scoped, tag = 'scoped memory for _lambda_.1']
    #allocation5 [shape = 'u8[16384]{0}', space=vmem, size = 0x4000, scoped, tag = 'input window, operand 4, single buffered']
    #allocation6 [shape = 's32[1]{0}', space=sflag, size = 0x4, scoped, tag = 'scoped memory for _lambda_.1']
    #allocation7 [shape = 'u8[4096]{0}', space=vmem, size = 0x1000, scoped, tag = 'input window, operand 5, single buffered']
    #allocation8 [shape = 'u8[4096]{0}', space=vmem, size = 0x1000, scoped, tag = 'input window, operand 6, single buffered']
    #allocation9 [shape = 's32[1]{0}', space=sflag, size = 0x4, scoped, tag = 'scoped memory for _lambda_.1']
    #allocation10 [shape = 'u8[4096]{0}', space=vmem, size = 0x1000, scoped, tag = 'input window, operand 7, single buffered']
    %16 = vsyncpa [#allocation4], 0
    %17 = vsyncpa [#allocation6], 0
    %18 = vsyncpa [#allocation9], 0
    // Predicated region
    $region2: #{_lambda_.1} parent=1 // pred_check
      _
    $region3: #{_lambda_.1} parent=1 // pred_check_branch
      %20 = sbr.rel (0) target = $region5
    $region4: #{_lambda_.1} parent=1 // pred_region
      _
    $region5: #{_lambda_.1} parent=1 // pred_fallthru
      _
    // Predicated region
    $region6: #{_lambda_.1} parent=1 // pred_check
      _
    $region7: #{_lambda_.1} parent=1 // pred_check_branch
      %22 = sbr.rel (0) target = $region9
    $region8: #{_lambda_.1} parent=1 // pred_region
      %s24 = ssub.s32 1024, 1024
      %25 = vsyncadd [#allocation4], %s24
      %s26 = sshll.u32 [#allocation3], 4
      %s27 = int_to_ptr.vmem [resolvable:$true] %s26
      %32 = dma.hbm_to_vmem [thread:$0]  %s1, 1024, %s27, [#allocation4], 64, 64, 4
    $region9: #{_lambda_.1} parent=1 // pred_fallthru
      _
    // Predicated region
    $region10: #{_lambda_.1} parent=1 // pred_check
      _
    $region11: #{_lambda_.1} parent=1 // pred_check_branch
      %34 = sbr.rel (0) target = $region13
    $region12: #{_lambda_.1} parent=1 // pred_region
      _
    $region13: #{_lambda_.1} parent=1 // pred_fallthru
      _
    // Predicated region
    $region14: #{_lambda_.1} parent=1 // pred_check
      _
    $region15: #{_lambda_.1} parent=1 // pred_check_branch
      %36 = sbr.rel (0) target = $region17
    $region16: #{_lambda_.1} parent=1 // pred_region
      _
    $region17: #{_lambda_.1} parent=1 // pred_fallthru
      _
    // Predicated region
    $region18: #{_lambda_.1} parent=1 // pred_check
      _
    $region19: #{_lambda_.1} parent=1 // pred_check_branch
      %38 = sbr.rel (0) target = $region21
    $region20: #{_lambda_.1} parent=1 // pred_region
      %s40 = ssub.s32 512, 512
      %41 = vsyncadd [#allocation6], %s40
      %s42 = sshll.u32 [#allocation5], 4
      %s43 = int_to_ptr.vmem [resolvable:$true] %s42
      %48 = dma.hbm_to_vmem [thread:$0]  %s4, 512, %s43, [#allocation6], 128, 128, 8
    $region21: #{_lambda_.1} parent=1 // pred_fallthru
      _
    // Predicated region
    $region22: #{_lambda_.1} parent=1 // pred_check
      _
    $region23: #{_lambda_.1} parent=1 // pred_check_branch
      %50 = sbr.rel (0) target = $region25
    $region24: #{_lambda_.1} parent=1 // pred_region
      %s52 = ssub.s32 128, 128
      %53 = vsyncadd [#allocation6], %s52
      %s55 = sshll.u32 [#allocation7], 4
      %s56 = int_to_ptr.vmem [resolvable:$true] %s55
      %58 = dma.hbm_to_vmem [thread:$0]  %s5, 128, %s56, [#allocation6]
    $region25: #{_lambda_.1} parent=1 // pred_fallthru
      _
    // Predicated region
    $region26: #{_lambda_.1} parent=1 // pred_check
      _
    $region27: #{_lambda_.1} parent=1 // pred_check_branch
      %60 = sbr.rel (0) target = $region29
    $region28: #{_lambda_.1} parent=1 // pred_region
      %s62 = ssub.s32 128, 128
      %63 = vsyncadd [#allocation9], %s62
      %s65 = sshll.u32 [#allocation8], 4
      %s66 = int_to_ptr.vmem [resolvable:$true] %s65
      %68 = dma.hbm_to_vmem [thread:$0]  %s6, 128, %s66, [#allocation9]
    $region29: #{_lambda_.1} parent=1 // pred_fallthru
      _
    // Predicated region
    $region30: #{_lambda_.1} parent=1 // pred_check
      _
    $region31: #{_lambda_.1} parent=1 // pred_check_branch
      %70 = sbr.rel (0) target = $region33
    $region32: #{_lambda_.1} parent=1 // pred_region
      %s72 = ssub.s32 128, 128
      %73 = vsyncadd [#allocation9], %s72
      %s75 = sshll.u32 [#allocation10], 4
      %s76 = int_to_ptr.vmem [resolvable:$true] %s75
      %78 = dma.hbm_to_vmem [thread:$0]  %s7, 128, %s76, [#allocation9]
    $region33: #{_lambda_.1} parent=1 // pred_fallthru
      _
    // Predicated region
    $region34: #{_lambda_.1} parent=1 // pred_check
      _
    $region35: #{_lambda_.1} parent=1 // pred_check_branch
      %80 = sbr.rel (0) target = $region37
    $region36: #{_lambda_.1} parent=1 // pred_region
      _
    $region37: #{_lambda_.1} parent=1 // pred_fallthru
      _
    // Predicated region
    $region38: #{_lambda_.1} parent=1 // pred_check
      _
    $region39: #{_lambda_.1} parent=1 // pred_check_branch
      %82 = sbr.rel (0) target = $region41
    $region40: #{_lambda_.1} parent=1 // pred_region
      %83 = dma.done [#allocation4], 1024
    $region41: #{_lambda_.1} parent=1 // pred_fallthru
      _
    // Predicated region
    $region42: #{_lambda_.1} parent=1 // pred_check
      _
    $region43: #{_lambda_.1} parent=1 // pred_check_branch
      %85 = sbr.rel (0) target = $region45
    $region44: #{_lambda_.1} parent=1 // pred_region
      %86 = dma.done [#allocation6], 512
    $region45: #{_lambda_.1} parent=1 // pred_fallthru
      _
    // Predicated region
    $region46: #{_lambda_.1} parent=1 // pred_check
      _
    $region47: #{_lambda_.1} parent=1 // pred_check_branch
      %88 = sbr.rel (0) target = $region49
    $region48: #{_lambda_.1} parent=1 // pred_region
      %89 = dma.done [#allocation6], 128
    $region49: #{_lambda_.1} parent=1 // pred_fallthru
      _
    // Predicated region
    $region50: #{_lambda_.1} parent=1 // pred_check
      _
    $region51: #{_lambda_.1} parent=1 // pred_check_branch
      %91 = sbr.rel (0) target = $region53
    $region52: #{_lambda_.1} parent=1 // pred_region
      %92 = dma.done [#allocation9], 128
    $region53: #{_lambda_.1} parent=1 // pred_fallthru
      _
    // Predicated region
    $region54: #{_lambda_.1} parent=1 // pred_check
      _
    $region55: #{_lambda_.1} parent=1 // pred_check_branch
      %94 = sbr.rel (0) target = $region57
    $region56: #{_lambda_.1} parent=1 // pred_region
      %95 = dma.done [#allocation9], 128
    $region57: #{_lambda_.1} parent=1 // pred_fallthru
      _
    %v97 = vld [vmem:[#allocation3] sm:$0xf]
    %v98 = vld [vmem:[#allocation3 + $0x4] sm:$0xf]
    %v99 = vld [vmem:[#allocation3 + $0x8] sm:$0xf]
    %v100 = vld [vmem:[#allocation3 + $0xc] sm:$0xf]
    %v101 = vld [vmem:[#allocation3 + $0x10] sm:$0xf]
    %v102 = vld [vmem:[#allocation3 + $0x14] sm:$0xf]
    %v103 = vld [vmem:[#allocation3 + $0x18] sm:$0xf]
    %v104 = vld [vmem:[#allocation3 + $0x1c] sm:$0xf]
    %v105 = vld [vmem:[#allocation3 + $0x20] sm:$0xf]
    %v106 = vld [vmem:[#allocation3 + $0x24] sm:$0xf]
    %v107 = vld [vmem:[#allocation3 + $0x28] sm:$0xf]
    %v108 = vld [vmem:[#allocation3 + $0x2c] sm:$0xf]
    %v109 = vld [vmem:[#allocation3 + $0x30] sm:$0xf]
    %v110 = vld [vmem:[#allocation3 + $0x34] sm:$0xf]
    %v111 = vld [vmem:[#allocation3 + $0x38] sm:$0xf]
    %v112 = vld [vmem:[#allocation3 + $0x3c] sm:$0xf]
    %v113 = vld [vmem:[%s0] sm:$0xf]
    %v114 = vld [vmem:[%s0 + $0x4] sm:$0xf]
    %v115 = vld [vmem:[%s0 + $0x8] sm:$0xf]
    %v116 = vld [vmem:[%s0 + $0xc] sm:$0xf]
    %v117 = vld [vmem:[%s0 + $0x10] sm:$0xf]
    %v118 = vld [vmem:[%s0 + $0x14] sm:$0xf]
    %v119 = vld [vmem:[%s0 + $0x18] sm:$0xf]
    %v120 = vld [vmem:[%s0 + $0x1c] sm:$0xf]
    %v121 = vld [vmem:[%s2] sm:$0xff]
    %v122 = vld [vmem:[%s2 + $0x8] sm:$0xff]
    %v123 = vld [vmem:[%s2 + $0x10] sm:$0xff]
    %v124 = vld [vmem:[%s2 + $0x18] sm:$0xff]
    %v125 = vld [vmem:[%s2 + $0x20] sm:$0xff]
    %v126 = vld [vmem:[%s2 + $0x28] sm:$0xff]
    %v127 = vld [vmem:[%s2 + $0x30] sm:$0xff]
    %v128 = vld [vmem:[%s2 + $0x38] sm:$0xff]
    %v129 = vld [vmem:[%s2 + $0x40] sm:$0xff]
    %v130 = vld [vmem:[%s2 + $0x48] sm:$0xff]
    %v131 = vld [vmem:[%s2 + $0x50] sm:$0xff]
    %v132 = vld [vmem:[%s2 + $0x58] sm:$0xff]
    %v133 = vld [vmem:[%s2 + $0x60] sm:$0xff]
    %v134 = vld [vmem:[%s2 + $0x68] sm:$0xff]
    %v135 = vld [vmem:[%s2 + $0x70] sm:$0xff]
    %v136 = vld [vmem:[%s2 + $0x78] sm:$0xff]
    %138 = vset.pattern.permute.xlu0 0
    %139 = vperm.xlu0 %138, %v121
    %v140 = vpop.permute.xlu0 %139
    %143 = vset.pattern.permute.xlu0 0
    %144 = vperm.xlu0 %143, %v122
    %v145 = vpop.permute.xlu0 %144
    %148 = vset.pattern.permute.xlu0 0
    %149 = vperm.xlu0 %148, %v123
    %v150 = vpop.permute.xlu0 %149
    %153 = vset.pattern.permute.xlu0 0
    %154 = vperm.xlu0 %153, %v124
    %v155 = vpop.permute.xlu0 %154
    %158 = vset.pattern.permute.xlu0 0
    %159 = vperm.xlu0 %158, %v125
    %v160 = vpop.permute.xlu0 %159
    %163 = vset.pattern.permute.xlu0 0
    %164 = vperm.xlu0 %163, %v126
    %v165 = vpop.permute.xlu0 %164
    %168 = vset.pattern.permute.xlu0 0
    %169 = vperm.xlu0 %168, %v127
    %v170 = vpop.permute.xlu0 %169
    %173 = vset.pattern.permute.xlu0 0
    %174 = vperm.xlu0 %173, %v128
    %v175 = vpop.permute.xlu0 %174
    %178 = vset.pattern.permute.xlu0 0
    %179 = vperm.xlu0 %178, %v129
    %v180 = vpop.permute.xlu0 %179
    %183 = vset.pattern.permute.xlu0 0
    %184 = vperm.xlu0 %183, %v130
    %v185 = vpop.permute.xlu0 %184
    %188 = vset.pattern.permute.xlu0 0
    %189 = vperm.xlu0 %188, %v131
    %v190 = vpop.permute.xlu0 %189
    %193 = vset.pattern.permute.xlu0 0
    %194 = vperm.xlu0 %193, %v132
    %v195 = vpop.permute.xlu0 %194
    %198 = vset.pattern.permute.xlu0 0
    %199 = vperm.xlu0 %198, %v133
    %v200 = vpop.permute.xlu0 %199
    %203 = vset.pattern.permute.xlu0 0
    %204 = vperm.xlu0 %203, %v134
    %v205 = vpop.permute.xlu0 %204
    %208 = vset.pattern.permute.xlu0 0
    %209 = vperm.xlu0 %208, %v135
    %v210 = vpop.permute.xlu0 %209
    %213 = vset.pattern.permute.xlu0 0
    %214 = vperm.xlu0 %213, %v136
    %v215 = vpop.permute.xlu0 %214
    %v233 = vunpack.c.l.b16 %v97
    %v234 = vunpack.c.l.b16 %v98
    %v235 = vunpack.c.l.b16 %v99
    %v236 = vunpack.c.l.b16 %v100
    %v237 = vunpack.c.l.b16 %v101
    %v238 = vunpack.c.l.b16 %v102
    %v239 = vunpack.c.l.b16 %v103
    %v240 = vunpack.c.l.b16 %v104
    %v241 = vunpack.c.l.b16 %v105
    %v242 = vunpack.c.l.b16 %v106
    %v243 = vunpack.c.l.b16 %v107
    %v244 = vunpack.c.l.b16 %v108
    %v245 = vunpack.c.l.b16 %v109
    %v246 = vunpack.c.l.b16 %v110
    %v247 = vunpack.c.l.b16 %v111
    %v248 = vunpack.c.l.b16 %v112
    %v249 = vpack.c.b16 %v234, %v233
    %v250 = vpack.c.b16 %v236, %v235
    %v251 = vpack.c.b16 %v238, %v237
    %v252 = vpack.c.b16 %v240, %v239
    %v253 = vpack.c.b16 %v242, %v241
    %v254 = vpack.c.b16 %v244, %v243
    %v255 = vpack.c.b16 %v246, %v245
    %v256 = vpack.c.b16 %v248, %v247
    %v265 = vunpack.c.l.b16 %v113
    %v266 = vunpack.c.l.b16 %v114
    %v267 = vunpack.c.l.b16 %v115
    %v268 = vunpack.c.l.b16 %v116
    %v269 = vunpack.c.l.b16 %v117
    %v270 = vunpack.c.l.b16 %v118
    %v271 = vunpack.c.l.b16 %v119
    %v272 = vunpack.c.l.b16 %v120
    %v273 = vpack.c.b16 %v266, %v265
    %v274 = vpack.c.b16 %v268, %v267
    %v275 = vpack.c.b16 %v270, %v269
    %v276 = vpack.c.b16 %v272, %v271
    %vm281 = vcmask 523264
    %v283 = vsel %vm281, %v249, 0
    %v286 = vsel %vm281, %v250, 0
    %v289 = vsel %vm281, %v251, 0
    %v292 = vsel %vm281, %v252, 0
    %v295 = vsel %vm281, %v253, 0
    %v298 = vsel %vm281, %v254, 0
    %v301 = vsel %vm281, %v255, 0
    %v304 = vsel %vm281, %v256, 0
    %306 = vmatprep.subr.bf16.mxu0 0
    %307 = vmatpush1.bf16.msra.mxu0 %v273
    %308 = vmatprep.subr.bf16.mxu0 0
    %309 = vmatpush1.bf16.msra.mxu0 %v274
    %310 = vmatprep.subr.bf16.mxu0 0
    %311 = vmatpush1.bf16.msra.mxu0 %v275
    %312 = vmatprep.subr.bf16.mxu0 0
    %313 = vmatpush1.bf16.msra.mxu0 %v276
    %314 = vmatprep.subr.bf16.mxu0 0
    %315 = vmatpush1.bf16.msra.mxu0 0
    %316 = vmatprep.subr.bf16.mxu0 0
    %317 = vmatpush1.bf16.msra.mxu0 0
    %318 = vmatprep.subr.bf16.mxu0 0
    %319 = vmatpush1.bf16.msra.mxu0 0
    %320 = vmatprep.subr.bf16.mxu0 0
    %321 = vmatpush1.bf16.msra.mxu0 0
    %322 = vmatprep.subr.bf16.mxu0 0
    %323 = vmatpush1.bf16.msra.mxu0 0
    %324 = vmatprep.subr.bf16.mxu0 0
    %325 = vmatpush1.bf16.msra.mxu0 0
    %326 = vmatprep.subr.bf16.mxu0 0
    %327 = vmatpush1.bf16.msra.mxu0 0
    %328 = vmatprep.subr.bf16.mxu0 0
    %329 = vmatpush1.bf16.msra.mxu0 0
    %330 = vmatprep.subr.bf16.mxu0 0
    %331 = vmatpush1.bf16.msra.mxu0 0
    %332 = vmatprep.subr.bf16.mxu0 0
    %333 = vmatpush1.bf16.msra.mxu0 0
    %334 = vmatprep.subr.bf16.mxu0 0
    %335 = vmatpush1.bf16.msra.mxu0 0
    %336 = vmatprep.subr.bf16.mxu0 0
    %337 = vmatpush1.bf16.msra.mxu0 0
    %338 = vmatprep.mubr.bf16.mxu0 0
    %339 = vmatmul.mubr.bf16.gmra.mrb[0].mxu0 %v283
    %v340 = vpop.f32.mrb[0].mxu0
    %v341 = vadd.f32 %v140, %v340
    %v342 = vpop.f32.mrb[0].mxu0
    %v343 = vpop.f32.mrb[0].mxu0
    %v344 = vadd.f32 %v145, %v343
    %v345 = vpop.f32.mrb[0].mxu0
    %346 = vmatprep.mubr.bf16.mxu0 0
    %347 = vmatmul.mubr.bf16.gmra.mrb[0].mxu0 %v286
    %v348 = vpop.f32.mrb[0].mxu0
    %v349 = vadd.f32 %v150, %v348
    %v350 = vpop.f32.mrb[0].mxu0
    %v351 = vpop.f32.mrb[0].mxu0
    %v352 = vadd.f32 %v155, %v351
    %v353 = vpop.f32.mrb[0].mxu0
    %354 = vmatprep.mubr.bf16.mxu0 0
    %355 = vmatmul.mubr.bf16.gmra.mrb[0].mxu0 %v289
    %v356 = vpop.f32.mrb[0].mxu0
    %v357 = vadd.f32 %v160, %v356
    %v358 = vpop.f32.mrb[0].mxu0
    %v359 = vpop.f32.mrb[0].mxu0
    %v360 = vadd.f32 %v165, %v359
    %v361 = vpop.f32.mrb[0].mxu0
    %362 = vmatprep.mubr.bf16.mxu0 0
    %363 = vmatmul.mubr.bf16.gmra.mrb[0].mxu0 %v292
    %v364 = vpop.f32.mrb[0].mxu0
    %v365 = vadd.f32 %v170, %v364
    %v366 = vpop.f32.mrb[0].mxu0
    %v367 = vpop.f32.mrb[0].mxu0
    %v368 = vadd.f32 %v175, %v367
    %v369 = vpop.f32.mrb[0].mxu0
    %370 = vmatprep.mubr.bf16.mxu0 0
    %371 = vmatmul.mubr.bf16.gmra.mrb[0].mxu0 %v295
    %v372 = vpop.f32.mrb[0].mxu0
    %v373 = vadd.f32 %v180, %v372
    %v374 = vpop.f32.mrb[0].mxu0
    %v375 = vpop.f32.mrb[0].mxu0
    %v376 = vadd.f32 %v185, %v375
    %v377 = vpop.f32.mrb[0].mxu0
    %378 = vmatprep.mubr.bf16.mxu0 0
    %379 = vmatmul.mubr.bf16.gmra.mrb[0].mxu0 %v298
    %v380 = vpop.f32.mrb[0].mxu0
    %v381 = vadd.f32 %v190, %v380
    %v382 = vpop.f32.mrb[0].mxu0
    %v383 = vpop.f32.mrb[0].mxu0
    %v384 = vadd.f32 %v195, %v383
    %v385 = vpop.f32.mrb[0].mxu0
    %386 = vmatprep.mubr.bf16.mxu0 0
    %387 = vmatmul.mubr.bf16.gmra.mrb[0].mxu0 %v301
    %v388 = vpop.f32.mrb[0].mxu0
    %v389 = vadd.f32 %v200, %v388
    %v390 = vpop.f32.mrb[0].mxu0
    %v391 = vpop.f32.mrb[0].mxu0
    %v392 = vadd.f32 %v205, %v391
    %v393 = vpop.f32.mrb[0].mxu0
    %394 = vmatprep.mubr.bf16.mxu0 0
    %395 = vmatmul.mubr.bf16.gmra.mrb[0].mxu0 %v304
    %v396 = vpop.f32.mrb[0].mxu0
    %v397 = vadd.f32 %v210, %v396
    %v398 = vpop.f32.mrb[0].mxu0
    %v399 = vpop.f32.mrb[0].mxu0
    %v400 = vadd.f32 %v215, %v399
    %v401 = vpop.f32.mrb[0].mxu0
    %402 = vdwg.mxu0
    %v403 = vmax.f32 %v341, 0.0
    %v404 = vmax.f32 %v344, 0.0
    %v405 = vmax.f32 %v349, 0.0
    %v406 = vmax.f32 %v352, 0.0
    %v407 = vmax.f32 %v357, 0.0
    %v408 = vmax.f32 %v360, 0.0
    %v409 = vmax.f32 %v365, 0.0
    %v410 = vmax.f32 %v368, 0.0
    %v411 = vmax.f32 %v373, 0.0
    %v412 = vmax.f32 %v376, 0.0
    %v413 = vmax.f32 %v381, 0.0
    %v414 = vmax.f32 %v384, 0.0
    %v415 = vmax.f32 %v389, 0.0
    %v416 = vmax.f32 %v392, 0.0
    %v417 = vmax.f32 %v397, 0.0
    %v418 = vmax.f32 %v400, 0.0
    %v419 = vld [vmem:[%s3] sm:$0xf]
    %v420 = vld [vmem:[%s3 + $0x4] sm:$0xf]
    %v421 = vld [vmem:[%s3 + $0x8] sm:$0xf]
    %v422 = vld [vmem:[%s3 + $0xc] sm:$0xf]
    %v423 = vpack.c.bf16 %v404, %v403
    %v424 = vpack.c.bf16 %v406, %v405
    %v425 = vpack.c.bf16 %v408, %v407
    %v426 = vpack.c.bf16 %v410, %v409
    %v427 = vpack.c.bf16 %v412, %v411
    %v428 = vpack.c.bf16 %v414, %v413
    %v429 = vpack.c.bf16 %v416, %v415
    %v430 = vpack.c.bf16 %v418, %v417
    %v431 = vld [vmem:[#allocation5] sm:$0xff]
    %v432 = vld [vmem:[#allocation5 + $0x8] sm:$0xff]
    %v433 = vld [vmem:[#allocation5 + $0x10] sm:$0xff]
    %v434 = vld [vmem:[#allocation5 + $0x18] sm:$0xff]
    %436 = vset.pattern.permute.xlu0 0
    %437 = vperm.xlu0 %436, %v431
    %v438 = vpop.permute.xlu0 %437
    %441 = vset.pattern.permute.xlu0 0
    %442 = vperm.xlu0 %441, %v432
    %v443 = vpop.permute.xlu0 %442
    %446 = vset.pattern.permute.xlu0 0
    %447 = vperm.xlu0 %446, %v433
    %v448 = vpop.permute.xlu0 %447
    %451 = vset.pattern.permute.xlu0 0
    %452 = vperm.xlu0 %451, %v434
    %v453 = vpop.permute.xlu0 %452
    %v459 = vunpack.c.l.b16 %v419
    %v460 = vunpack.c.l.b16 %v420
    %v461 = vunpack.c.l.b16 %v421
    %v462 = vunpack.c.l.b16 %v422
    %v463 = vpack.c.b16 %v460, %v459
    %v464 = vpack.c.b16 %v462, %v461
    %467 = vmatprep.subr.bf16.mxu0 0
    %468 = vmatpush1.bf16.msra.mxu0 %v423
    %469 = vmatprep.subr.bf16.mxu0 0
    %470 = vmatpush1.bf16.msra.mxu0 %v424
    %471 = vmatprep.subr.bf16.mxu0 0
    %472 = vmatpush1.bf16.msra.mxu0 %v425
    %473 = vmatprep.subr.bf16.mxu0 0
    %474 = vmatpush1.bf16.msra.mxu0 %v426
    %475 = vmatprep.subr.bf16.mxu0 0
    %476 = vmatpush1.bf16.msra.mxu0 %v427
    %477 = vmatprep.subr.bf16.mxu0 0
    %478 = vmatpush1.bf16.msra.mxu0 %v428
    %479 = vmatprep.subr.bf16.mxu0 0
    %480 = vmatpush1.bf16.msra.mxu0 %v429
    %481 = vmatprep.subr.bf16.mxu0 0
    %482 = vmatpush1.bf16.msra.mxu0 %v430
    %483 = vmatprep.subr.bf16.mxu0 0
    %484 = vmatpush1.bf16.msra.mxu0 0
    %485 = vmatprep.subr.bf16.mxu0 0
    %486 = vmatpush1.bf16.msra.mxu0 0
    %487 = vmatprep.subr.bf16.mxu0 0
    %488 = vmatpush1.bf16.msra.mxu0 0
    %489 = vmatprep.subr.bf16.mxu0 0
    %490 = vmatpush1.bf16.msra.mxu0 0
    %491 = vmatprep.subr.bf16.mxu0 0
    %492 = vmatpush1.bf16.msra.mxu0 0
    %493 = vmatprep.subr.bf16.mxu0 0
    %494 = vmatpush1.bf16.msra.mxu0 0
    %495 = vmatprep.subr.bf16.mxu0 0
    %496 = vmatpush1.bf16.msra.mxu0 0
    %497 = vmatprep.subr.bf16.mxu0 0
    %498 = vmatpush1.bf16.msra.mxu0 0
    %499 = vmatprep.mubr.bf16.mxu0 0
    %500 = vmatmul.mubr.bf16.gmra.mrb[0].mxu0 %v463
    %v501 = vpop.f32.mrb[0].mxu0
    %v502 = vadd.f32 %v438, %v501
    %v503 = vpop.f32.mrb[0].mxu0
    %v504 = vpop.f32.mrb[0].mxu0
    %v505 = vadd.f32 %v443, %v504
    %v506 = vpop.f32.mrb[0].mxu0
    %507 = vmatprep.mubr.bf16.mxu0 0
    %508 = vmatmul.mubr.bf16.gmra.mrb[0].mxu0 %v464
    %v509 = vpop.f32.mrb[0].mxu0
    %v510 = vadd.f32 %v448, %v509
    %v511 = vpop.f32.mrb[0].mxu0
    %v512 = vpop.f32.mrb[0].mxu0
    %v513 = vadd.f32 %v453, %v512
    %v514 = vpop.f32.mrb[0].mxu0
    %515 = vdwg.mxu0
    %v516 = vmax.f32 %v502, 0.0
    %v517 = vmax.f32 %v505, 0.0
    %v518 = vmax.f32 %v510, 0.0
    %v519 = vmax.f32 %v513, 0.0
    %v520 = vld [vmem:[#allocation7] sm:$0xff]
    %v521 = vld [vmem:[#allocation8] sm:$0xff]
    %523 = vset.pattern.permute.xlu0 0
    %524 = vperm.xlu0 %523, %v521
    %v525 = vpop.permute.xlu0 %524
    %vm527 = vcmask 261120
    %v529 = vsel %vm527, %v520, 0
    %531 = vmatprep.subr.mxu0 0.0
    %532 = vmatpush1.msra.mxu0 %v516
    %533 = vmatprep.subr.mxu0 0.0
    %534 = vmatpush1.msra.mxu0 %v517
    %535 = vmatprep.subr.mxu0 0.0
    %536 = vmatpush1.msra.mxu0 %v518
    %537 = vmatprep.subr.mxu0 0.0
    %538 = vmatpush1.msra.mxu0 %v519
    %539 = vmatprep.subr.mxu0 0.0
    %540 = vmatpush1.msra.mxu0 0.0
    %541 = vmatprep.subr.mxu0 0.0
    %542 = vmatpush1.msra.mxu0 0.0
    %543 = vmatprep.subr.mxu0 0.0
    %544 = vmatpush1.msra.mxu0 0.0
    %545 = vmatprep.subr.mxu0 0.0
    %546 = vmatpush1.msra.mxu0 0.0
    %547 = vmatprep.subr.mxu0 0.0
    %548 = vmatpush1.msra.mxu0 0.0
    %549 = vmatprep.subr.mxu0 0.0
    %550 = vmatpush1.msra.mxu0 0.0
    %551 = vmatprep.subr.mxu0 0.0
    %552 = vmatpush1.msra.mxu0 0.0
    %553 = vmatprep.subr.mxu0 0.0
    %554 = vmatpush1.msra.mxu0 0.0
    %555 = vmatprep.subr.mxu0 0.0
    %556 = vmatpush1.msra.mxu0 0.0
    %557 = vmatprep.subr.mxu0 0.0
    %558 = vmatpush1.msra.mxu0 0.0
    %559 = vmatprep.subr.mxu0 0.0
    %560 = vmatpush1.msra.mxu0 0.0
    %561 = vmatprep.subr.mxu0 0.0
    %562 = vmatpush1.msra.mxu0 0.0
    %563 = vmatprep.subr.mxu0 0.0
    %564 = vmatpush1.msra.mxu0 0.0
    %565 = vmatprep.subr.mxu0 0.0
    %566 = vmatpush1.msra.mxu0 0.0
    %567 = vmatprep.subr.mxu0 0.0
    %568 = vmatpush1.msra.mxu0 0.0
    %569 = vmatprep.subr.mxu0 0.0
    %570 = vmatpush1.msra.mxu0 0.0
    %571 = vmatprep.subr.mxu0 0.0
    %572 = vmatpush1.msra.mxu0 0.0
    %573 = vmatprep.subr.mxu0 0.0
    %574 = vmatpush1.msra.mxu0 0.0
    %575 = vmatprep.subr.mxu0 0.0
    %576 = vmatpush1.msra.mxu0 0.0
    %577 = vmatprep.subr.mxu0 0.0
    %578 = vmatpush1.msra.mxu0 0.0
    %579 = vmatprep.subr.mxu0 0.0
    %580 = vmatpush1.msra.mxu0 0.0
    %581 = vmatprep.subr.mxu0 0.0
    %582 = vmatpush1.msra.mxu0 0.0
    %583 = vmatprep.subr.mxu0 0.0
    %584 = vmatpush1.msra.mxu0 0.0
    %585 = vmatprep.subr.mxu0 0.0
    %586 = vmatpush1.msra.mxu0 0.0
    %587 = vmatprep.subr.mxu0 0.0
    %588 = vmatpush1.msra.mxu0 0.0
    %589 = vmatprep.subr.mxu0 0.0
    %590 = vmatpush1.msra.mxu0 0.0
    %591 = vmatprep.subr.mxu0 0.0
    %592 = vmatpush1.msra.mxu0 0.0
    %593 = vmatprep.subr.mxu0 0.0
    %594 = vmatpush1.msra.mxu0 0.0
    %595 = vmatprep.mubr.f32.mxu0 0.0
    %596 = vmatmul.mubr.f32.gmra.mrb[0].mxu0 %v529
    %v597 = vpop.f32.mrb[0].mxu0
    %v598 = vadd.f32 %v525, %v597
    %v599 = vpop.f32.mrb[0].mxu0
    %600 = vdwg.mxu0
    %v601 = vmax.f32 %v598, 0.0
    %v602 = vld [vmem:[#allocation10] sm:$0xff]
    %604 = vset.pattern.permute.xlu0 0
    %605 = vperm.xlu0 %604, %v602
    %v606 = vpop.permute.xlu0 %605
    %v608 = vmul.f32 %v601, %v606
    %v609 = vrot.slane %v608, 4
    %v610 = vadd.f32 %v608, %v609
    %v611 = vrot.slane %v610, 2
    %v612 = vadd.f32 %v610, %v611
    %v613 = vrot.slane %v612, 1
    %v614 = vadd.f32 %v612, %v613
    %v615 = vld [vmem:[#allocation2] sm:$0x1]
    %617 = vset.pattern.permute.xlu0 0
    %618 = vperm.xlu0 %617, %v615
    %v619 = vpop.permute.xlu0 %618
    %v621 = vlaneseq
    %v622 = vshrl.u32 %v621, 7
    %v623 = vsub.s32 0, %v622
    %v624 = vrot.slane %v619, %v623
    %v625 = vadd.f32 %v614, %v624
    %v626 = vxor.u32 %v625, 2147483648
    %v627 = vmul.f32 %v626, 1.442695
    %v628 = vpow.pop %v627
    %v629 = vadd.f32 %v628, 1.0
    %v630 = vrcp.pop %v629
    %v631 = vmul.f32 1.0, %v630
    %632 = vst [vmem:[%s9] sm:$0x1] %v631
    // Predicated region
    $region58: #{_lambda_.1} parent=1 // pred_check
      _
    $region59: #{_lambda_.1} parent=1 // pred_check_branch
      %634 = sbr.rel (0) target = $region61
    $region60: #{_lambda_.1} parent=1 // pred_region
      _
    $region61: #{_lambda_.1} parent=1 // pred_fallthru
      _
    // Predicated region
    $region62: #{_lambda_.1} parent=1 // pred_check
      _
    $region63: #{_lambda_.1} parent=1 // pred_check_branch
      %636 = sbr.rel (0) target = $region65
    $region64: #{_lambda_.1} parent=1 // pred_region
      _
    $region65: #{_lambda_.1} parent=1 // pred_fallthru
      _
    %637 = vsyncpa [#allocation4], 1
    %638 = vsyncpa [#allocation6], 1
    %639 = vsyncpa [#allocation9], 1

</llo_original>
